<compile_context>
chip_gen: v5e
topology: v5e:2x2
jax: 0.10.0
libtpu: 0.0.40
codegen_flags: <defaults>
</compile_context>

<pallas_src>
import functools

import jax
import jax.numpy as jnp
from jax.experimental import pallas as pl
from jax.experimental.pallas import tpu as pltpu


# ---------------------------------------------------------------------------
# Kernel: per-point MLP + per-sample (segment) max pool.
#   grid = (n_split, tiles_per_split); leading axis "parallel" (v7x 2-TC split),
#   inner axis "arbitrary" (cross-tile max reduction into the resident output
#   block owned by this split).
# ---------------------------------------------------------------------------
def _mlp_pool_kernel(slab_ref, pA_ref, pool_ref, *, hidden, n_samples):
    i = pl.program_id(1)

    @pl.when(i == 0)
    def _():
        pool_ref[...] = jnp.full(pool_ref.shape, -jnp.inf, jnp.float32)

    blk = slab_ref[...]                                    # (8, T) f32, one vreg-dense load
    x = blk[0:4, :]                                        # features: x, y, z, refl
    bid = blk[4:5, :]                                      # (1, T) batch id as f32 (-1 = padding)

    # packed params: [W2 (H,H) | W1 (H,4) | b1 (H,1) | b2 (H,1)], W2 lane-aligned at 0.
    w2 = pA_ref[:, 0:hidden]
    w1 = pA_ref[:, hidden:hidden + 4]
    b1 = pA_ref[:, hidden + 4:hidden + 5]
    b2 = pA_ref[:, hidden + 5:hidden + 6]

    # Layer 1: contraction depth is only 4 -> VPU broadcast-MACs (skip MXU).
    h = w1[:, 0:1] * x[0:1, :]                             # (H, T)
    for kdim in range(1, 4):
        h = h + w1[:, kdim:kdim + 1] * x[kdim:kdim + 1, :]
    h = jnp.maximum(h + b1, 0.0)

    # Layer 2: (H,H) x (H,T) on the MXU with a lane-dense RHS.
    h = jnp.maximum(
        jnp.dot(w2, h, preferred_element_type=jnp.float32) + b2, 0.0)  # (H, T)

    # Per-sample partial max over this tile; padded points (bid = -1) never match.
    # Static loop is fine at tiny B; switch to a segment-contiguous reduction if
    # num_samples grows into the tens (O(B) XLU/store work per tile otherwise).
    for b in range(n_samples):
        masked = jnp.where(bid == float(b), h, -jnp.inf)   # (H, T)
        col = jnp.max(masked, axis=1, keepdims=True)       # (H, 1) lane reduce
        pool_ref[:, :, b:b + 1] = jnp.maximum(pool_ref[:, :, b:b + 1], col[None])


def binary_reflectance_gate(pos, reflectance, batch, params, gumbel, *,
                            num_samples, hidden_dim=16, temperature=1.0,
                            max_tile=4096):
    """pos (P,3) f32, reflectance (P,) f32, batch (P,) int ids in [0, B).
    gumbel: (B, 2) standard Gumbel noise.  Returns (P,) f32."""
    (w1, b1, w2, b2, wg, bg) = params
    P = pos.shape[0]
    H = hidden_dim
    B = num_samples

    # ---- tiling: big lane tiles; single grid step for small point clouds ----
    p128 = pl.cdiv(P, 128) * 128
    tile = min(max_tile, p128)
    n_tiles = pl.cdiv(P, tile)
    n_split = 2 if n_tiles >= 2 else 1          # v7x: shard tiles across both TCs
    n_half = pl.cdiv(n_tiles, n_split)
    P_pad = n_split * n_half * tile

    # ---- glue: pack point data into one (8, P_pad) slab ---------------------
    # TODO(synk): upstream should ideally hand us channel-major (C, P) points so
    # this stack/pad pass over the point cloud disappears entirely.
    feat5 = jnp.stack(
        [pos[:, 0], pos[:, 1], pos[:, 2], reflectance,
         batch.astype(jnp.float32)], axis=0).astype(jnp.float32)       # (5, P)
    # pad value -1: padded columns carry batch id -1 -> excluded from the pool.
    slab = jnp.pad(feat5, ((0, 3), (0, P_pad - P)), constant_values=-1.0)

    # ---- glue: pack MLP params, W2 first so the MXU LHS is lane-aligned -----
    pA = jnp.concatenate(
        [w2, w1, b1[:, None], b2[:, None]], axis=1).astype(jnp.float32)  # (H, H+6)

    # ---- Pallas: per-point MLP + per-split partial segment max-pool ---------
    partial_pool = pl.pallas_call(
        functools.partial(_mlp_pool_kernel, hidden=H, n_samples=B),
        out_shape=jax.ShapeDtypeStruct((n_split, H, B), jnp.float32),
        grid_spec=pltpu.PrefetchScalarGridSpec(
            num_scalar_prefetch=0,
            grid=(n_split, n_half),
            in_specs=[
                pl.BlockSpec((8, tile), lambda c, i: (0, c * n_half + i)),  # point slab
                pl.BlockSpec(pA.shape, lambda c, i: (0, 0)),                # packed params
            ],
            out_specs=pl.BlockSpec((1, H, B), lambda c, i: (c, 0, 0)),      # per-split acc
        ),
        compiler_params=pltpu.CompilerParams(
            dimension_semantics=("parallel", "arbitrary")),
    )(slab, pA)

    # ---- XLA epilogue: cross-split combine + tiny gate softmax + apply ------
    # (fuses into a couple of tiny ops plus one streaming pass over the points)
    pooled = jnp.max(partial_pool, axis=0)                    # (H, B)
    logits = pooled.T @ wg.T + bg                             # (B, 2)
    y = jax.nn.softmax((logits + gumbel) / temperature, axis=-1)
    gate = y[:, 1]                                            # P(use reflectance) per sample
    return gate[batch] * reflectance


def _reference(pos, reflectance, batch, params, gumbel, *, num_samples,
               temperature):
    """Pure-JAX mirror of the PyTorch forward (hard=False gumbel-softmax)."""
    (w1, b1, w2, b2, wg, bg) = params
    feat = jnp.concatenate([pos, reflectance[:, None]], axis=-1)
    h = jnp.maximum(feat @ w1.T + b1, 0.0)
    h = jnp.maximum(h @ w2.T + b2, 0.0)
    pooled = jnp.full((num_samples, h.shape[1]), -jnp.inf,
                      h.dtype).at[batch].max(h)               # global_max_pool
    logits = pooled @ wg.T + bg
    y = jax.nn.softmax((logits + gumbel) / temperature, axis=-1)
    return y[:, 1][batch] * reflectance


if __name__ == "__main__":
    P, B, H = 200, 2, 16          # points, samples, hidden_dim
    tau = 1.0

    key = jax.random.PRNGKey(0)
    k = jax.random.split(key, 8)

    pos = jax.random.normal(k[0], (P, 3), jnp.float32)
    reflectance = jax.random.uniform(k[1], (P,), jnp.float32)
    batch = jnp.concatenate([jnp.zeros(100, jnp.int32),
                             jnp.ones(P - 100, jnp.int32)])

    params = (
        jax.random.normal(k[2], (H, 4), jnp.float32) * 0.5,    # point_nn Linear(4,H) W
        jax.random.normal(k[3], (H,), jnp.float32) * 0.1,      # bias
        jax.random.normal(k[4], (H, H), jnp.float32) * 0.3,    # point_nn Linear(H,H) W
        jax.random.normal(k[5], (H,), jnp.float32) * 0.1,      # bias
        jax.random.normal(k[6], (2, H), jnp.float32) * 0.3,    # gate_nn W
        jnp.array([0.0, 2.0], jnp.float32),                    # gate_nn bias (module init)
    )
    # Gumbel(0,1) noise == torch's -(-Exp(1)).log(); sampled in the wrapper and
    # shared with the pure-JAX reference so the kernel stays deterministic.
    gumbel = jax.random.gumbel(k[7], (B, 2), jnp.float32)

    out = binary_reflectance_gate(pos, reflectance, batch, params, gumbel,
                                  num_samples=B, hidden_dim=H, temperature=tau)
    out = jax.block_until_ready(out)

    ref = _reference(pos, reflectance, batch, params, gumbel,
                     num_samples=B, temperature=tau)
    assert out.shape == ref.shape
    assert jnp.allclose(out, ref, atol=1e-5, rtol=1e-4), "mismatch vs JAX reference"

    print("KERNEL_OK")
</pallas_src>

<mosaic_0001>
module attributes {stable_mosaic.version = 11 : i64} {
  func.func @_mlp_pool_kernel(%arg0: i32, %arg1: i32, %arg2: memref<8x256xf32, #tpu.memory_space<vmem>>, %arg3: memref<16x22xf32, #tpu.memory_space<vmem>>, %arg4: memref<1x16x2xf32, #tpu.memory_space<vmem>>) attributes {dimension_semantics = [#tpu.dimension_semantics<parallel>, #tpu.dimension_semantics<arbitrary>], iteration_bounds = array<i64: 1, 1>, scalar_prefetch = 0 : i64, scratch_operands = 0 : i64, tpu.core_type = #tpu.core_type<tc>, window_params = [{transform_indices = @transform_0, window_bounds = array<i64: 8, 256>}, {pipeline_mode = #tpu.pipeline_mode<synchronous>, transform_indices = @transform_1, window_bounds = array<i64: 16, 22>}, {transform_indices = @transform_2, window_bounds = array<i64: 1, 16, 2>}]} {
    %c0_i32 = arith.constant 0 : i32
    %0 = arith.cmpi eq, %arg1, %c0_i32 : i32
    %1 = arith.extui %0 : i1 to i32
    %c0_i32_0 = arith.constant 0 : i32
    %2 = arith.cmpi ne, %1, %c0_i32_0 : i32
    scf.if %2 {
      %cst_26 = arith.constant 0xFF800000 : f32
      %66 = vector.broadcast %cst_26 : f32 to vector<1x16x2xf32>
      %c0_27 = arith.constant 0 : index
      %c0_28 = arith.constant 0 : index
      %c0_29 = arith.constant 0 : index
      %67 = vector.load %arg4[%c0_27, %c0_28, %c0_29] : memref<1x16x2xf32, #tpu.memory_space<vmem>>, vector<1x16x2xf32>
      tpu.vector_store %arg4[%c0_27, %c0_28, %c0_29], %66 {strides = array<i32>} : memref<1x16x2xf32, #tpu.memory_space<vmem>>, vector<1x16x2xf32>,
    } else {
    }
    %c0 = arith.constant 0 : index
    %c0_1 = arith.constant 0 : index
    %3 = vector.load %arg2[%c0, %c0_1] : memref<8x256xf32, #tpu.memory_space<vmem>>, vector<8x256xf32>
    %4 = vector.extract_strided_slice %3 {offsets = [0, 0], sizes = [4, 256], strides = [1, 1]} : vector<8x256xf32> to vector<4x256xf32>
    %5 = vector.extract_strided_slice %3 {offsets = [4, 0], sizes = [1, 256], strides = [1, 1]} : vector<8x256xf32> to vector<1x256xf32>
    %c0_2 = arith.constant 0 : index
    %c0_3 = arith.constant 0 : index
    %6 = vector.load %arg3[%c0_2, %c0_3] : memref<16x22xf32, #tpu.memory_space<vmem>>, vector<16x16xf32>
    %c0_4 = arith.constant 0 : index
    %c16 = arith.constant 16 : index
    %7 = vector.load %arg3[%c0_4, %c16] : memref<16x22xf32, #tpu.memory_space<vmem>>, vector<16x4xf32>
    %c0_5 = arith.constant 0 : index
    %c20 = arith.constant 20 : index
    %8 = vector.load %arg3[%c0_5, %c20] : memref<16x22xf32, #tpu.memory_space<vmem>>, vector<16x1xf32>
    %c0_6 = arith.constant 0 : index
    %c21 = arith.constant 21 : index
    %9 = vector.load %arg3[%c0_6, %c21] : memref<16x22xf32, #tpu.memory_space<vmem>>, vector<16x1xf32>
    %10 = vector.extract_strided_slice %7 {offsets = [0, 0], sizes = [16, 1], strides = [1, 1]} : vector<16x4xf32> to vector<16x1xf32>
    %11 = vector.extract_strided_slice %4 {offsets = [0, 0], sizes = [1, 256], strides = [1, 1]} : vector<4x256xf32> to vector<1x256xf32>
    %12 = vector.broadcast %10 : vector<16x1xf32> to vector<16x256xf32>
    %13 = vector.broadcast %11 : vector<1x256xf32> to vector<16x256xf32>
    %14 = arith.mulf %12, %13 : vector<16x256xf32>
    %15 = vector.extract_strided_slice %7 {offsets = [0, 1], sizes = [16, 1], strides = [1, 1]} : vector<16x4xf32> to vector<16x1xf32>
    %16 = vector.extract_strided_slice %4 {offsets = [1, 0], sizes = [1, 256], strides = [1, 1]} : vector<4x256xf32> to vector<1x256xf32>
    %17 = vector.broadcast %15 : vector<16x1xf32> to vector<16x256xf32>
    %18 = vector.broadcast %16 : vector<1x256xf32> to vector<16x256xf32>
    %19 = arith.mulf %17, %18 : vector<16x256xf32>
    %20 = arith.addf %14, %19 : vector<16x256xf32>
    %21 = vector.extract_strided_slice %7 {offsets = [0, 2], sizes = [16, 1], strides = [1, 1]} : vector<16x4xf32> to vector<16x1xf32>
    %22 = vector.extract_strided_slice %4 {offsets = [2, 0], sizes = [1, 256], strides = [1, 1]} : vector<4x256xf32> to vector<1x256xf32>
    %23 = vector.broadcast %21 : vector<16x1xf32> to vector<16x256xf32>
    %24 = vector.broadcast %22 : vector<1x256xf32> to vector<16x256xf32>
    %25 = arith.mulf %23, %24 : vector<16x256xf32>
    %26 = arith.addf %20, %25 : vector<16x256xf32>
    %27 = vector.extract_strided_slice %7 {offsets = [0, 3], sizes = [16, 1], strides = [1, 1]} : vector<16x4xf32> to vector<16x1xf32>
    %28 = vector.extract_strided_slice %4 {offsets = [3, 0], sizes = [1, 256], strides = [1, 1]} : vector<4x256xf32> to vector<1x256xf32>
    %29 = vector.broadcast %27 : vector<16x1xf32> to vector<16x256xf32>
    %30 = vector.broadcast %28 : vector<1x256xf32> to vector<16x256xf32>
    %31 = arith.mulf %29, %30 : vector<16x256xf32>
    %32 = arith.addf %26, %31 : vector<16x256xf32>
    %33 = vector.broadcast %8 : vector<16x1xf32> to vector<16x256xf32>
    %34 = arith.addf %32, %33 : vector<16x256xf32>
    %cst = arith.constant 0.000000e+00 : f32
    %35 = vector.broadcast %cst : f32 to vector<16x256xf32>
    %36 = arith.maximumf %34, %35 : vector<16x256xf32>
    %cst_7 = arith.constant dense<0.000000e+00> : vector<16x256xf32>
    %37 = tpu.matmul %6, %36, %cst_7 {dimension_numbers = #tpu.dot_dimension_numbers<[1], [0], [0], [1], [0, 0, 1, 1], [], []>} : vector<16x16xf32>, vector<16x256xf32>, vector<16x256xf32> -> vector<16x256xf32>
    %38 = vector.broadcast %9 : vector<16x1xf32> to vector<16x256xf32>
    %39 = arith.addf %37, %38 : vector<16x256xf32>
    %cst_8 = arith.constant 0.000000e+00 : f32
    %40 = vector.broadcast %cst_8 : f32 to vector<16x256xf32>
    %41 = arith.maximumf %39, %40 : vector<16x256xf32>
    %cst_9 = arith.constant 0.000000e+00 : f32
    %42 = vector.broadcast %cst_9 : f32 to vector<1x256xf32>
    %43 = arith.cmpf oeq, %5, %42 : vector<1x256xf32>
    %cst_10 = arith.constant 0xFF800000 : f32
    %44 = vector.shape_cast %43 : vector<1x256xi1> to vector<1x256xi1>
    %45 = vector.broadcast %44 : vector<1x256xi1> to vector<16x256xi1>
    %46 = vector.broadcast %cst_10 : f32 to vector<16x256xf32>
    %47 = arith.select %45, %41, %46 : vector<16x256xi1>, vector<16x256xf32>
    %cst_11 = arith.constant dense<0xFF800000> : vector<16xf32>
    %48 = vector.multi_reduction <maximumf>, %47, %cst_11 [1] : vector<16x256xf32> to vector<16xf32>
    %49 = vector.shape_cast %48 : vector<16xf32> to vector<16x1xf32>
    %c0_12 = arith.constant 0 : index
    %c0_13 = arith.constant 0 : index
    %c0_14 = arith.constant 0 : index
    %50 = vector.load %arg4[%c0_12, %c0_13, %c0_14] : memref<1x16x2xf32, #tpu.memory_space<vmem>>, vector<1x16x1xf32>
    %51 = vector.shape_cast %49 : vector<16x1xf32> to vector<1x16x1xf32>
    %52 = arith.maximumf %50, %51 : vector<1x16x1xf32>
    %c0_15 = arith.constant 0 : index
    %c0_16 = arith.constant 0 : index
    %c0_17 = arith.constant 0 : index
    %53 = vector.load %arg4[%c0_15, %c0_16, %c0_17] : memref<1x16x2xf32, #tpu.memory_space<vmem>>, vector<1x16x1xf32>
    tpu.vector_store %arg4[%c0_15, %c0_16, %c0_17], %52 {strides = array<i32>} : memref<1x16x2xf32, #tpu.memory_space<vmem>>, vector<1x16x1xf32>,
    %cst_18 = arith.constant 1.000000e+00 : f32
    %54 = vector.broadcast %cst_18 : f32 to vector<1x256xf32>
    %55 = arith.cmpf oeq, %5, %54 : vector<1x256xf32>
    %cst_19 = arith.constant 0xFF800000 : f32
    %56 = vector.shape_cast %55 : vector<1x256xi1> to vector<1x256xi1>
    %57 = vector.broadcast %56 : vector<1x256xi1> to vector<16x256xi1>
    %58 = vector.broadcast %cst_19 : f32 to vector<16x256xf32>
    %59 = arith.select %57, %41, %58 : vector<16x256xi1>, vector<16x256xf32>
    %cst_20 = arith.constant dense<0xFF800000> : vector<16xf32>
    %60 = vector.multi_reduction <maximumf>, %59, %cst_20 [1] : vector<16x256xf32> to vector<16xf32>
    %61 = vector.shape_cast %60 : vector<16xf32> to vector<16x1xf32>
    %c0_21 = arith.constant 0 : index
    %c0_22 = arith.constant 0 : index
    %c1 = arith.constant 1 : index
    %62 = vector.load %arg4[%c0_21, %c0_22, %c1] : memref<1x16x2xf32, #tpu.memory_space<vmem>>, vector<1x16x1xf32>
    %63 = vector.shape_cast %61 : vector<16x1xf32> to vector<1x16x1xf32>
    %64 = arith.maximumf %62, %63 : vector<1x16x1xf32>
    %c0_23 = arith.constant 0 : index
    %c0_24 = arith.constant 0 : index
    %c1_25 = arith.constant 1 : index
    %65 = vector.load %arg4[%c0_23, %c0_24, %c1_25] : memref<1x16x2xf32, #tpu.memory_space<vmem>>, vector<1x16x1xf32>
    tpu.vector_store %arg4[%c0_23, %c0_24, %c1_25], %64 {strides = array<i32>} : memref<1x16x2xf32, #tpu.memory_space<vmem>>, vector<1x16x1xf32>,
    return
  }
  func.func @transform_0(%arg0: i32, %arg1: i32) -> (i32, i32) {
    %c1_i32 = arith.constant 1 : i32
    %0 = arith.muli %arg0, %c1_i32 : i32
    %1 = arith.addi %0, %arg1 : i32
    %c0_i32 = arith.constant 0 : i32
    %c0_i32_0 = arith.constant 0 : i32
    return %c0_i32, %1 : i32, i32
  }
  func.func @transform_1(%arg0: i32, %arg1: i32) -> (i32, i32) {
    %c0_i32 = arith.constant 0 : i32
    %c0_i32_0 = arith.constant 0 : i32
    %c0_i32_1 = arith.constant 0 : i32
    return %c0_i32, %c0_i32_0 : i32, i32
  }
  func.func @transform_2(%arg0: i32, %arg1: i32) -> (i32, i32, i32) {
    %c0_i32 = arith.constant 0 : i32
    %c0_i32_0 = arith.constant 0 : i32
    %c0_i32_1 = arith.constant 0 : i32
    return %arg0, %c0_i32, %c0_i32_0 : i32, i32, i32
  }
}

</mosaic_0001>

<llo_original>
// kernel: tpu_custom_call.1
$region0: #{tpu_custom_call.1}
  #allocation0 [shape = 'u32[]', space=smem, size = 0x4, offset = 0x4, fixed_abs, tag = 'smem constant byte address 0x4 - core index']
  #allocation1 [shape = 'u32[72,128]{1,0:T(1,128)}', space=vmem, size = 0x9000, scoped, tag = 'internal scratch']
  %s0 = inlined_call_operand.hbm [shape: f32[8,256], index: 0, kind: input, shape index: {}]
  %s1 = inlined_call_operand.hbm [shape: f32[16,22], index: 1, kind: input, shape index: {}]
  %s2 = inlined_call_operand.vmem [shape: f32[1,16,2], index: 2, kind: output, shape index: {}]
  %s3 = sld [smem:[#allocation0]]
  $region30: #{tpu_custom_call.1} parent=0
    _
  %s5 = ssub.s32 1, %s3
  %s6 = scalar_select 0, %s5, %s3
  $region1: #{tpu_custom_call.1} parent=0
    #allocation2 [shape = 'u8[8192]{0}', space=vmem, size = 0x2000, scoped, tag = 'input window, operand 0, single buffered']
    #allocation3 [shape = 's32[1]{0}', space=sflag, size = 0x4, scoped, tag = 'scoped memory for tpu_custom_call.1']
    #allocation4 [shape = 'u8[8192]{0}', space=vmem, size = 0x2000, scoped, tag = 'input window, operand 1, single buffered']
    #allocation5 [shape = 's32[1]{0}', space=sflag, size = 0x4, scoped, tag = 'scoped memory for tpu_custom_call.1']
    %7 = vsyncpa [#allocation3], 0
    %8 = vsyncpa [#allocation5], 0
    // Predicated region
    $region2: #{tpu_custom_call.1} parent=1 // pred_check
      _
    $region3: #{tpu_custom_call.1} parent=1 // pred_check_branch
      %10 = sbr.rel (0) target = $region5
    $region4: #{tpu_custom_call.1} parent=1 // pred_region
      %s11 = sadd.s32 0, 0
      %s12 = smul.u32 2, %s11
      %14 = vsyncadd [#allocation3], 0
      %s15 = smul.addr %s12, 8
      %s16 = scalar_lea.hbm %s0, %s15
      %s18 = sshll.u32 %s16, 4
      %s19 = int_to_ptr.hbm [resolvable:$true] %s18
      %s20 = sshll.u32 [#allocation2], 4
      %s21 = int_to_ptr.vmem [resolvable:$true] %s20
      %23 = dma.hbm_to_vmem [thread:$0]  %s19, 256, %s21, [#allocation3]
    $region5: #{tpu_custom_call.1} parent=1 // pred_fallthru
      _
    // Predicated region
    $region6: #{tpu_custom_call.1} parent=1 // pred_check
      _
    $region7: #{tpu_custom_call.1} parent=1 // pred_check_branch
      %25 = sbr.rel (0) target = $region9
    $region8: #{tpu_custom_call.1} parent=1 // pred_region
      %27 = vsyncadd [#allocation5], 0
      %s28 = sshll.u32 %s1, 4
      %s29 = int_to_ptr.hbm [resolvable:$true] %s28
      %s30 = sshll.u32 [#allocation4], 4
      %s31 = int_to_ptr.vmem [resolvable:$true] %s30
      %36 = dma.hbm_to_vmem [thread:$0]  %s29, 256, %s31, [#allocation5], 128, 128, 8
    $region9: #{tpu_custom_call.1} parent=1 // pred_fallthru
      _
    // Predicated region
    $region10: #{tpu_custom_call.1} parent=1 // pred_check
      _
    $region11: #{tpu_custom_call.1} parent=1 // pred_check_branch
      %38 = sbr.rel (0) target = $region13
    $region12: #{tpu_custom_call.1} parent=1 // pred_region
      %40 = dma.done [#allocation3], 256
    $region13: #{tpu_custom_call.1} parent=1 // pred_fallthru
      _
    // Predicated region
    $region14: #{tpu_custom_call.1} parent=1 // pred_check
      _
    $region15: #{tpu_custom_call.1} parent=1 // pred_check_branch
      %42 = sbr.rel (0) target = $region17
    $region16: #{tpu_custom_call.1} parent=1 // pred_region
      %44 = dma.done [#allocation5], 256
    $region17: #{tpu_custom_call.1} parent=1 // pred_fallthru
      _
    %s45 = sadd.s32 0, 0
    %s46 = smul.u32 2, %s45
    %p47 = scmp.eq.s32.totalorder 0, 0
    // Predicated region
    $region18: #{tpu_custom_call.1} parent=1 // pred_check
      %p48 = pneg %p47
    $region19: #{tpu_custom_call.1} parent=1 // pred_check_branch
      %50 = sbr.rel (%p48) target = $region21
    $region20: #{tpu_custom_call.1} parent=1 // pred_region
      %vm51 = vcmask 15360
      %52 = vst.msk [vmem:[%s2] sm:$0xff] %vm51, -inf
      %53 = vst.msk [vmem:[%s2 + $0x8] sm:$0xff] %vm51, -inf
    $region21: #{tpu_custom_call.1} parent=1 // pred_fallthru
      _
    %v54 = vld [vmem:[#allocation2] sm:$0xff]
    %v55 = vld [vmem:[#allocation2 + $0x8] sm:$0xff]
    %v56 = vld [vmem:[#allocation4] sm:$0xff]
    %v57 = vld [vmem:[#allocation4 + $0x8] sm:$0xff]
    %59 = vset.pattern.permute.xlu0 16
    %60 = vperm.xlu0 %59, %v56
    %v61 = vpop.permute.xlu0 %60
    %64 = vset.pattern.permute.xlu0 16
    %65 = vperm.xlu0 %64, %v57
    %v66 = vpop.permute.xlu0 %65
    %v68 = vperm.slane %v54, 0
    %v69 = vperm.slane %v55, 0
    %v70 = vmul.f32 %v61, %v68
    %v71 = vmul.f32 %v61, %v69
    %v72 = vmul.f32 %v66, %v68
    %v73 = vmul.f32 %v66, %v69
    %74 = vset.pattern.permute.xlu0 17
    %75 = vperm.xlu0 %74, %v56
    %v76 = vpop.permute.xlu0 %75
    %78 = vset.pattern.permute.xlu0 17
    %79 = vperm.xlu0 %78, %v57
    %v80 = vpop.permute.xlu0 %79
    %v82 = vperm.slane %v54, 1
    %v83 = vperm.slane %v55, 1
    %v84 = vmul.f32 %v76, %v82
    %v85 = vmul.f32 %v76, %v83
    %v86 = vmul.f32 %v80, %v82
    %v87 = vmul.f32 %v80, %v83
    %v88 = vadd.f32 %v70, %v84
    %v89 = vadd.f32 %v71, %v85
    %v90 = vadd.f32 %v72, %v86
    %v91 = vadd.f32 %v73, %v87
    %92 = vset.pattern.permute.xlu0 18
    %93 = vperm.xlu0 %92, %v56
    %v94 = vpop.permute.xlu0 %93
    %96 = vset.pattern.permute.xlu0 18
    %97 = vperm.xlu0 %96, %v57
    %v98 = vpop.permute.xlu0 %97
    %v100 = vperm.slane %v54, 2
    %v101 = vperm.slane %v55, 2
    %v102 = vmul.f32 %v94, %v100
    %v103 = vmul.f32 %v94, %v101
    %v104 = vmul.f32 %v98, %v100
    %v105 = vmul.f32 %v98, %v101
    %v106 = vadd.f32 %v88, %v102
    %v107 = vadd.f32 %v89, %v103
    %v108 = vadd.f32 %v90, %v104
    %v109 = vadd.f32 %v91, %v105
    %110 = vset.pattern.permute.xlu0 19
    %111 = vperm.xlu0 %110, %v56
    %v112 = vpop.permute.xlu0 %111
    %114 = vset.pattern.permute.xlu0 19
    %115 = vperm.xlu0 %114, %v57
    %v116 = vpop.permute.xlu0 %115
    %v118 = vperm.slane %v54, 3
    %v119 = vperm.slane %v55, 3
    %v120 = vmul.f32 %v112, %v118
    %v121 = vmul.f32 %v112, %v119
    %v122 = vmul.f32 %v116, %v118
    %v123 = vmul.f32 %v116, %v119
    %v124 = vadd.f32 %v106, %v120
    %v125 = vadd.f32 %v107, %v121
    %v126 = vadd.f32 %v108, %v122
    %v127 = vadd.f32 %v109, %v123
    %128 = vset.pattern.permute.xlu0 20
    %129 = vperm.xlu0 %128, %v56
    %v130 = vpop.permute.xlu0 %129
    %132 = vset.pattern.permute.xlu0 20
    %133 = vperm.xlu0 %132, %v57
    %v134 = vpop.permute.xlu0 %133
    %v136 = vadd.f32 %v124, %v130
    %v137 = vadd.f32 %v125, %v130
    %v138 = vadd.f32 %v126, %v134
    %v139 = vadd.f32 %v127, %v134
    %v140 = vmax.f32 %v136, 0.0
    %v141 = vmax.f32 %v137, 0.0
    %v142 = vmax.f32 %v138, 0.0
    %v143 = vmax.f32 %v139, 0.0
    %144 = vset.pattern.permute.xlu0 21
    %145 = vperm.xlu0 %144, %v56
    %v146 = vpop.permute.xlu0 %145
    %148 = vset.pattern.permute.xlu0 21
    %149 = vperm.xlu0 %148, %v57
    %v150 = vpop.permute.xlu0 %149
    %vm152 = vcmask 130048
    %v153 = vsel %vm152, %v56, 0
    %v155 = vsel %vm152, %v57, 0
    %157 = vmatpush.msra.mxu0 0.0
    %158 = vmatpush.msra.mxu0 0.0
    %159 = vmatpush.msra.mxu0 0.0
    %160 = vmatpush.msra.mxu0 0.0
    %161 = vmatpush.msra.mxu0 0.0
    %162 = vmatpush.msra.mxu0 0.0
    %163 = vmatpush.msra.mxu0 0.0
    %164 = vmatpush.msra.mxu0 0.0
    %165 = vmatpush.msra.mxu0 0.0
    %166 = vmatpush.msra.mxu0 0.0
    %167 = vmatpush.msra.mxu0 0.0
    %168 = vmatpush.msra.mxu0 0.0
    %169 = vmatpush.msra.mxu0 0.0
    %170 = vmatpush.msra.mxu0 0.0
    %171 = vmatpush.msra.mxu0 %v142
    %172 = vmatpush.msra.mxu0 %v140
    %173 = vmatmul.f32.gmra.mxu0 %v153
    %v174 = vpop.f32.mrf.mxu0
    %v175 = vadd.f32 %v146, %v174
    %176 = vmatmul.f32.gmra.mxu0 %v155
    %v177 = vpop.f32.mrf.mxu0
    %v178 = vadd.f32 %v150, %v177
    %179 = vdwg.mxu0
    %180 = vmatpush.msra.mxu0 0.0
    %181 = vmatpush.msra.mxu0 0.0
    %182 = vmatpush.msra.mxu0 0.0
    %183 = vmatpush.msra.mxu0 0.0
    %184 = vmatpush.msra.mxu0 0.0
    %185 = vmatpush.msra.mxu0 0.0
    %186 = vmatpush.msra.mxu0 0.0
    %187 = vmatpush.msra.mxu0 0.0
    %188 = vmatpush.msra.mxu0 0.0
    %189 = vmatpush.msra.mxu0 0.0
    %190 = vmatpush.msra.mxu0 0.0
    %191 = vmatpush.msra.mxu0 0.0
    %192 = vmatpush.msra.mxu0 0.0
    %193 = vmatpush.msra.mxu0 0.0
    %194 = vmatpush.msra.mxu0 %v143
    %195 = vmatpush.msra.mxu0 %v141
    %196 = vmatmul.f32.gmra.mxu0 %v153
    %v197 = vpop.f32.mrf.mxu0
    %v198 = vadd.f32 %v146, %v197
    %199 = vmatmul.f32.gmra.mxu0 %v155
    %v200 = vpop.f32.mrf.mxu0
    %v201 = vadd.f32 %v150, %v200
    %202 = vdwg.mxu0
    %v203 = vmax.f32 %v175, 0.0
    %v204 = vmax.f32 %v198, 0.0
    %v205 = vmax.f32 %v178, 0.0
    %v206 = vmax.f32 %v201, 0.0
    %vm207 = vcmp.eq.f32.partialorder %v54, 0.0
    %vm208 = vcmp.eq.f32.partialorder %v55, 0.0
    %v209 = vsel %vm207, 1, 0
    %v210 = vsel %vm208, 1, 0
    %v211 = vperm.slane %v209, 4
    %v212 = vperm.slane %v210, 4
    %vm213 = vcmp.eq.s32.totalorder %v211, 1
    %vm214 = vcmp.eq.s32.totalorder %v212, 1
    %v215 = vsel %vm213, %v203, -inf
    %v216 = vsel %vm214, %v204, -inf
    %v217 = vsel %vm213, %v205, -inf
    %v218 = vsel %vm214, %v206, -inf
    %v219 = vmax.f32 %v215, %v216
    %220 = vmax.xlane.f32.xlu0 %v219
    %v221 = vpop.xlane.xlu0 %220
    %v222 = vmax.f32 %v217, %v218
    %223 = vmax.xlane.f32.xlu0 %v222
    %v224 = vpop.xlane.xlu0 %223
    %v225 = vld [vmem:[%s2] sm:$0xff]
    %v226 = vld [vmem:[%s2 + $0x8] sm:$0xff]
    %v227 = vmax.f32 %v225, %v221
    %v228 = vmax.f32 %v226, %v224
    %vm229 = vcmask 7168
    %230 = vst.msk [vmem:[%s2] sm:$0xff] %vm229, %v227
    %231 = vst.msk [vmem:[%s2 + $0x8] sm:$0xff] %vm229, %v228
    %vm232 = vcmp.eq.f32.partialorder %v54, 1.0
    %vm233 = vcmp.eq.f32.partialorder %v55, 1.0
    %v234 = vsel %vm232, 1, 0
    %v235 = vsel %vm233, 1, 0
    %v236 = vperm.slane %v234, 4
    %v237 = vperm.slane %v235, 4
    %vm238 = vcmp.eq.s32.totalorder %v236, 1
    %vm239 = vcmp.eq.s32.totalorder %v237, 1
    %v240 = vsel %vm238, %v203, -inf
    %v241 = vsel %vm239, %v204, -inf
    %v242 = vsel %vm238, %v205, -inf
    %v243 = vsel %vm239, %v206, -inf
    %v244 = vmax.f32 %v240, %v241
    %245 = vmax.xlane.f32.xlu0 %v244
    %v246 = vpop.xlane.xlu0 %245
    %v247 = vmax.f32 %v242, %v243
    %248 = vmax.xlane.f32.xlu0 %v247
    %v249 = vpop.xlane.xlu0 %248
    %v250 = vld [vmem:[%s2] sm:$0xff]
    %v251 = vld [vmem:[%s2 + $0x8] sm:$0xff]
    %v252 = vmax.f32 %v250, %v246
    %v253 = vmax.f32 %v251, %v249
    %vm254 = vcmask 15368
    %255 = vst.msk [vmem:[%s2] sm:$0xff] %vm254, %v252
    %256 = vst.msk [vmem:[%s2 + $0x8] sm:$0xff] %vm254, %v253
    // Predicated region
    $region22: #{tpu_custom_call.1} parent=1 // pred_check
      _
    $region23: #{tpu_custom_call.1} parent=1 // pred_check_branch
      %258 = sbr.rel (0) target = $region25
    $region24: #{tpu_custom_call.1} parent=1 // pred_region
      _
    $region25: #{tpu_custom_call.1} parent=1 // pred_fallthru
      _
    // Predicated region
    $region26: #{tpu_custom_call.1} parent=1 // pred_check
      _
    $region27: #{tpu_custom_call.1} parent=1 // pred_check_branch
      %260 = sbr.rel (0) target = $region29
    $region28: #{tpu_custom_call.1} parent=1 // pred_region
      _
    $region29: #{tpu_custom_call.1} parent=1 // pred_fallthru
      _
    %261 = vsyncpa [#allocation3], 1
    %262 = vsyncpa [#allocation5], 1

</llo_original>
